<compile_context>
chip_gen: v5e
topology: v5e:2x2
jax: 0.10.0
libtpu: 0.0.40
codegen_flags: <defaults>
</compile_context>

<pallas_src>
import functools
from dataclasses import dataclass

import jax
import jax.numpy as jnp
from jax.experimental import pallas as pl
from jax.experimental.pallas import tpu as pltpu


@dataclass(frozen=True)
class Args:
    hid_size: int = 32
    layernorm: bool = True
    hid_activation: str = "relu"  # 'relu' or 'tanh'


def _round_up(n: int, m: int) -> int:
    return ((n + m - 1) // m) * m


def _critic_kernel(xT_ref, w1_ref, lnp_ref, w2_ref, b2_ref, vT_ref,
                   *, use_layernorm: bool, activation: str, eps: float):
    # fc1 (feature-major): (HID, IN) @ (IN, TB) -> (HID, TB).
    # Operands in stored dtype (bf16 fast MXU path if caller stores bf16);
    # accumulate in f32 via preferred_element_type.
    h = jnp.dot(w1_ref[...], xT_ref[...], preferred_element_type=jnp.float32)
    h = h + lnp_ref[:, 0:1].astype(jnp.float32)          # b1 column, bcast over lanes

    if use_layernorm:
        # Two-pass LayerNorm over HID (axis 0) -- matches torch.nn.LayerNorm.
        mean = jnp.mean(h, axis=0, keepdims=True)        # (1, TB)
        d = h - mean
        var = jnp.mean(d * d, axis=0, keepdims=True)     # (1, TB)
        h = d * jax.lax.rsqrt(var + eps)
        h = (h * lnp_ref[:, 1:2].astype(jnp.float32)     # gamma
             + lnp_ref[:, 2:3].astype(jnp.float32))      # beta

    if activation == "relu":
        h = jnp.maximum(h, 0.0)
    elif activation == "tanh":
        h = jnp.tanh(h)
    else:
        raise ValueError(f"unknown activation {activation}")

    # fc2: (OUT, HID) @ (HID, TB) -> (OUT, TB). Cast h to the weight dtype so
    # bf16 weights keep the bf16 MXU path (no-op for f32); accumulate in f32.
    v = jnp.dot(w2_ref[...], h.astype(w2_ref.dtype),
                preferred_element_type=jnp.float32)
    v = v + b2_ref[...].astype(jnp.float32)
    vT_ref[...] = v.astype(vT_ref.dtype)


def transformer_critic_forward(x, params, args: Args, hidden_state=None, *,
                               tb=None, num_cores=1,
                               x_feature_major=False, out_feature_major=False):
    """Pallas equivalent of TransformerCritic.forward. Returns (v, None).

    x: (B, IN) batch-major by default (module semantics). Callers that already
    keep activations feature-major can pass x as (IN, B) with
    x_feature_major=True and/or take the (OUT, B) result with
    out_feature_major=True to skip the layout-plumbing transposes entirely.
    On v7x pass num_cores=2 so large batches get exactly one balanced
    "parallel" grid step per TensorCore.
    """
    if args.hid_activation not in ("relu", "tanh"):
        raise ValueError(f"unknown activation {args.hid_activation}")

    w1, b1, w2, b2 = params["w1"], params["b1"], params["w2"], params["b2"]
    HID, IN = w1.shape
    OUT = w2.shape[0]
    gamma = params.get("gamma")
    beta = params.get("beta")
    if gamma is None:
        gamma = jnp.ones((HID,), w1.dtype)
    if beta is None:
        beta = jnp.zeros((HID,), w1.dtype)

    # Feature-major view of the input (layout plumbing only; skip via flag).
    xT = x if x_feature_major else x.T                       # (IN, B)
    B = xT.shape[1]

    # Pack bias + LN params into one tiny resident operand: (HID, 3).
    lnp = jnp.stack([b1.reshape(HID), gamma.reshape(HID), beta.reshape(HID)],
                    axis=-1)
    b2c = b2.reshape(OUT, 1)

    # Batch-tile heuristic: single full-array block whenever it fits a
    # generous cap; otherwise balanced 128-aligned tiles (lane constraint).
    TB_MAX = 8192
    if tb is None:
        n_target = max(int(num_cores), pl.cdiv(B, TB_MAX))
        tb = B if n_target <= 1 else _round_up(pl.cdiv(B, n_target), 128)
    tb = int(tb)
    if tb >= B:
        tb = B                      # block == full array: no (8,128) constraint
    elif tb % 128 != 0:
        tb = _round_up(tb, 128)     # lane alignment when actually tiling
        if tb >= B:
            tb = B
    n_blocks = pl.cdiv(B, tb)       # ragged last block handled by Pallas masking

    kernel = functools.partial(
        _critic_kernel,
        use_layernorm=bool(args.layernorm),
        activation=args.hid_activation,
        eps=1e-5,
    )

    vT = pl.pallas_call(
        kernel,
        out_shape=jax.ShapeDtypeStruct((OUT, B), x.dtype),
        grid_spec=pl.GridSpec(
            grid=(n_blocks,),
            in_specs=[
                pl.BlockSpec((IN, tb), lambda i: (0, i)),     # x^T tile (lane-dense)
                pl.BlockSpec((HID, IN), lambda i: (0, 0)),    # W1 (resident)
                pl.BlockSpec((HID, 3), lambda i: (0, 0)),     # [b1 | gamma | beta]
                pl.BlockSpec((OUT, HID), lambda i: (0, 0)),   # W2 (resident)
                pl.BlockSpec((OUT, 1), lambda i: (0, 0)),     # b2
            ],
            out_specs=pl.BlockSpec((OUT, tb), lambda i: (0, i)),  # v^T (lane-dense)
        ),
        compiler_params=pltpu.CompilerParams(
            dimension_semantics=("parallel",),
        ),
    )(xT, w1, lnp, w2, b2c)

    v = vT if out_feature_major else vT.T                     # (B, OUT)
    return v, None


def init_params(key, input_shape, hid_size, output_shape, dtype=jnp.float32):
    """Deterministic synthetic init in native PyTorch Linear/LayerNorm shapes."""
    k1, k2, k3, k4 = jax.random.split(key, 4)
    w1 = (jax.random.normal(k1, (hid_size, input_shape), dtype) /
          jnp.sqrt(jnp.asarray(input_shape, dtype)))
    b1 = jax.random.normal(k2, (hid_size,), dtype) * 0.01
    gamma = jnp.ones((hid_size,), dtype)
    beta = jnp.zeros((hid_size,), dtype)
    w2 = (jax.random.normal(k3, (output_shape, hid_size), dtype) /
          jnp.sqrt(jnp.asarray(hid_size, dtype)))
    b2 = jax.random.normal(k4, (output_shape,), dtype) * 0.01
    return dict(w1=w1, b1=b1, gamma=gamma, beta=beta, w2=w2, b2=b2)


def reference_forward(x, params, args: Args):
    """Pure-JAX reference (PyTorch-layout weights) for correctness checking."""
    h = x @ params["w1"].T + params["b1"]
    if args.layernorm:
        mean = jnp.mean(h, axis=-1, keepdims=True)
        var = jnp.mean((h - mean) ** 2, axis=-1, keepdims=True)
        h = (h - mean) * jax.lax.rsqrt(var + 1e-5) * params["gamma"] + params["beta"]
    h = jnp.maximum(h, 0.0) if args.hid_activation == "relu" else jnp.tanh(h)
    return h @ params["w2"].T + params["b2"]


if __name__ == "__main__":
    IN, OUT = 16, 4
    args = Args(hid_size=32, layernorm=True, hid_activation="relu")

    key = jax.random.PRNGKey(0)
    kx, kp, kx2, kx3 = jax.random.split(key, 4)
    params = init_params(kp, IN, args.hid_size, OUT)
    hidden_state = jnp.zeros((1, args.hid_size), jnp.float32)  # unused by forward

    # --- 1) small batch, f32, single full-array block ---
    x = jax.random.normal(kx, (8, IN), jnp.float32)
    v, h_out = transformer_critic_forward(x, params, args, hidden_state)
    v = jax.block_until_ready(v)
    assert v.shape == (8, OUT) and h_out is None
    assert jnp.allclose(v, reference_forward(x, params, args),
                        atol=1e-3, rtol=1e-3), "f32 single-block mismatch"

    # --- 2) multi-block path (tb=128, divides B) ---
    x2 = jax.random.normal(kx2, (384, IN), jnp.float32)
    v2, _ = transformer_critic_forward(x2, params, args, hidden_state, tb=128)
    v2 = jax.block_until_ready(v2)
    assert jnp.allclose(v2, reference_forward(x2, params, args),
                        atol=1e-3, rtol=1e-3), "f32 multi-block mismatch"

    # --- 3) ragged last block (B=300, tb=128): no jnp.pad / slice round trip ---
    x3 = jax.random.normal(kx3, (300, IN), jnp.float32)
    v3, _ = transformer_critic_forward(x3, params, args, hidden_state, tb=128)
    v3 = jax.block_until_ready(v3)
    assert v3.shape == (300, OUT)
    assert jnp.allclose(v3, reference_forward(x3, params, args),
                        atol=1e-3, rtol=1e-3), "f32 ragged-block mismatch"

    # --- 4) bf16 operand path (fast MXU path; f32 accumulation inside) ---
    x_bf = x.astype(jnp.bfloat16)
    params_bf = {k: p.astype(jnp.bfloat16) for k, p in params.items()}
    v_bf, _ = transformer_critic_forward(x_bf, params_bf, args, hidden_state)
    v_bf = jax.block_until_ready(v_bf)
    v_bf_ref = reference_forward(
        x_bf.astype(jnp.float32),
        {k: p.astype(jnp.float32) for k, p in params_bf.items()}, args)
    assert jnp.allclose(v_bf.astype(jnp.float32), v_bf_ref,
                        atol=3e-2, rtol=3e-2), "bf16 mismatch"

    # --- 5) tanh activation, no LayerNorm ---
    args_t = Args(hid_size=32, layernorm=False, hid_activation="tanh")
    v_t, _ = transformer_critic_forward(x, params, args_t, hidden_state)
    v_t = jax.block_until_ready(v_t)
    assert jnp.allclose(v_t, reference_forward(x, params, args_t),
                        atol=1e-3, rtol=1e-3), "tanh/no-LN mismatch"

    print("KERNEL_OK")
</pallas_src>

<mosaic_0001>
module attributes {stable_mosaic.version = 11 : i64} {
  func.func @_critic_kernel(%arg0: i32, %arg1: memref<16x8xf32, #tpu.memory_space<vmem>>, %arg2: memref<32x16xf32, #tpu.memory_space<vmem>>, %arg3: memref<32x3xf32, #tpu.memory_space<vmem>>, %arg4: memref<4x32xf32, #tpu.memory_space<vmem>>, %arg5: memref<4x1xf32, #tpu.memory_space<vmem>>, %arg6: memref<4x8xf32, #tpu.memory_space<vmem>>) attributes {dimension_semantics = [#tpu.dimension_semantics<parallel>], iteration_bounds = array<i64: 1>, scalar_prefetch = 0 : i64, scratch_operands = 0 : i64, tpu.core_type = #tpu.core_type<tc>, window_params = [{transform_indices = @transform_0, window_bounds = array<i64: 16, 8>}, {pipeline_mode = #tpu.pipeline_mode<synchronous>, transform_indices = @transform_1, window_bounds = array<i64: 32, 16>}, {pipeline_mode = #tpu.pipeline_mode<synchronous>, transform_indices = @transform_2, window_bounds = array<i64: 32, 3>}, {pipeline_mode = #tpu.pipeline_mode<synchronous>, transform_indices = @transform_3, window_bounds = array<i64: 4, 32>}, {pipeline_mode = #tpu.pipeline_mode<synchronous>, transform_indices = @transform_4, window_bounds = array<i64: 4, 1>}, {transform_indices = @transform_5, window_bounds = array<i64: 4, 8>}]} {
    %c0 = arith.constant 0 : index
    %c0_0 = arith.constant 0 : index
    %0 = vector.load %arg2[%c0, %c0_0] : memref<32x16xf32, #tpu.memory_space<vmem>>, vector<32x16xf32>
    %c0_1 = arith.constant 0 : index
    %c0_2 = arith.constant 0 : index
    %1 = vector.load %arg1[%c0_1, %c0_2] : memref<16x8xf32, #tpu.memory_space<vmem>>, vector<16x8xf32>
    %cst = arith.constant dense<0.000000e+00> : vector<32x8xf32>
    %2 = tpu.matmul %0, %1, %cst {dimension_numbers = #tpu.dot_dimension_numbers<[1], [0], [0], [1], [0, 0, 1, 1], [], []>} : vector<32x16xf32>, vector<16x8xf32>, vector<32x8xf32> -> vector<32x8xf32>
    %c0_3 = arith.constant 0 : index
    %c0_4 = arith.constant 0 : index
    %3 = vector.load %arg3[%c0_3, %c0_4] : memref<32x3xf32, #tpu.memory_space<vmem>>, vector<32x1xf32>
    %4 = vector.broadcast %3 : vector<32x1xf32> to vector<32x8xf32>
    %5 = arith.addf %2, %4 : vector<32x8xf32>
    %cst_5 = arith.constant dense<0.000000e+00> : vector<8xf32>
    %6 = vector.multi_reduction <add>, %5, %cst_5 [0] : vector<32x8xf32> to vector<8xf32>
    %7 = vector.shape_cast %6 : vector<8xf32> to vector<1x8xf32>
    %cst_6 = arith.constant 3.200000e+01 : f32
    %8 = vector.broadcast %cst_6 : f32 to vector<1x8xf32>
    %9 = arith.divf %7, %8 : vector<1x8xf32>
    %10 = vector.broadcast %9 : vector<1x8xf32> to vector<32x8xf32>
    %11 = arith.subf %5, %10 : vector<32x8xf32>
    %12 = arith.mulf %11, %11 : vector<32x8xf32>
    %cst_7 = arith.constant dense<0.000000e+00> : vector<8xf32>
    %13 = vector.multi_reduction <add>, %12, %cst_7 [0] : vector<32x8xf32> to vector<8xf32>
    %14 = vector.shape_cast %13 : vector<8xf32> to vector<1x8xf32>
    %cst_8 = arith.constant 3.200000e+01 : f32
    %15 = vector.broadcast %cst_8 : f32 to vector<1x8xf32>
    %16 = arith.divf %14, %15 : vector<1x8xf32>
    %cst_9 = arith.constant 9.99999974E-6 : f32
    %17 = vector.broadcast %cst_9 : f32 to vector<1x8xf32>
    %18 = arith.addf %16, %17 : vector<1x8xf32>
    %19 = math.rsqrt %18 : vector<1x8xf32>
    %20 = vector.broadcast %19 : vector<1x8xf32> to vector<32x8xf32>
    %21 = arith.mulf %11, %20 : vector<32x8xf32>
    %c0_10 = arith.constant 0 : index
    %c1 = arith.constant 1 : index
    %22 = vector.load %arg3[%c0_10, %c1] : memref<32x3xf32, #tpu.memory_space<vmem>>, vector<32x1xf32>
    %23 = vector.broadcast %22 : vector<32x1xf32> to vector<32x8xf32>
    %24 = arith.mulf %21, %23 : vector<32x8xf32>
    %c0_11 = arith.constant 0 : index
    %c2 = arith.constant 2 : index
    %25 = vector.load %arg3[%c0_11, %c2] : memref<32x3xf32, #tpu.memory_space<vmem>>, vector<32x1xf32>
    %26 = vector.broadcast %25 : vector<32x1xf32> to vector<32x8xf32>
    %27 = arith.addf %24, %26 : vector<32x8xf32>
    %cst_12 = arith.constant 0.000000e+00 : f32
    %28 = vector.broadcast %cst_12 : f32 to vector<32x8xf32>
    %29 = arith.maximumf %27, %28 : vector<32x8xf32>
    %c0_13 = arith.constant 0 : index
    %c0_14 = arith.constant 0 : index
    %30 = vector.load %arg4[%c0_13, %c0_14] : memref<4x32xf32, #tpu.memory_space<vmem>>, vector<4x32xf32>
    %cst_15 = arith.constant dense<0.000000e+00> : vector<4x8xf32>
    %31 = tpu.matmul %30, %29, %cst_15 {dimension_numbers = #tpu.dot_dimension_numbers<[1], [0], [0], [1], [0, 0, 1, 1], [], []>} : vector<4x32xf32>, vector<32x8xf32>, vector<4x8xf32> -> vector<4x8xf32>
    %c0_16 = arith.constant 0 : index
    %c0_17 = arith.constant 0 : index
    %32 = vector.load %arg5[%c0_16, %c0_17] : memref<4x1xf32, #tpu.memory_space<vmem>>, vector<4x1xf32>
    %33 = vector.broadcast %32 : vector<4x1xf32> to vector<4x8xf32>
    %34 = arith.addf %31, %33 : vector<4x8xf32>
    %c0_18 = arith.constant 0 : index
    %c0_19 = arith.constant 0 : index
    %35 = vector.load %arg6[%c0_18, %c0_19] : memref<4x8xf32, #tpu.memory_space<vmem>>, vector<4x8xf32>
    tpu.vector_store %arg6[%c0_18, %c0_19], %34 {strides = array<i32>} : memref<4x8xf32, #tpu.memory_space<vmem>>, vector<4x8xf32>,
    return
  }
  func.func @transform_0(%arg0: i32) -> (i32, i32) {
    %c0_i32 = arith.constant 0 : i32
    %c0_i32_0 = arith.constant 0 : i32
    return %c0_i32, %arg0 : i32, i32
  }
  func.func @transform_1(%arg0: i32) -> (i32, i32) {
    %c0_i32 = arith.constant 0 : i32
    %c0_i32_0 = arith.constant 0 : i32
    %c0_i32_1 = arith.constant 0 : i32
    return %c0_i32, %c0_i32_0 : i32, i32
  }
  func.func @transform_2(%arg0: i32) -> (i32, i32) {
    %c0_i32 = arith.constant 0 : i32
    %c0_i32_0 = arith.constant 0 : i32
    %c0_i32_1 = arith.constant 0 : i32
    return %c0_i32, %c0_i32_0 : i32, i32
  }
  func.func @transform_3(%arg0: i32) -> (i32, i32) {
    %c0_i32 = arith.constant 0 : i32
    %c0_i32_0 = arith.constant 0 : i32
    %c0_i32_1 = arith.constant 0 : i32
    return %c0_i32, %c0_i32_0 : i32, i32
  }
  func.func @transform_4(%arg0: i32) -> (i32, i32) {
    %c0_i32 = arith.constant 0 : i32
    %c0_i32_0 = arith.constant 0 : i32
    %c0_i32_1 = arith.constant 0 : i32
    return %c0_i32, %c0_i32_0 : i32, i32
  }
  func.func @transform_5(%arg0: i32) -> (i32, i32) {
    %c0_i32 = arith.constant 0 : i32
    %c0_i32_0 = arith.constant 0 : i32
    return %c0_i32, %arg0 : i32, i32
  }
}

</mosaic_0001>

<llo_original>
// kernel: tpu_custom_call.1
$region0: #{tpu_custom_call.1}
  #allocation0 [shape = 'u32[]', space=smem, size = 0x4, offset = 0x4, fixed_abs, tag = 'smem constant byte address 0x4 - core index']
  #allocation1 [shape = 'u32[72,128]{1,0:T(1,128)}', space=vmem, size = 0x9000, scoped, tag = 'internal scratch']
  %s0 = inlined_call_operand.vmem [shape: f32[16,8], index: 0, kind: input, shape index: {}]
  %s1 = inlined_call_operand.vmem [shape: f32[32,16], index: 1, kind: input, shape index: {}]
  %s2 = inlined_call_operand.vmem [shape: f32[32,3], index: 2, kind: input, shape index: {}]
  %s3 = inlined_call_operand.vmem [shape: f32[4,32], index: 3, kind: input, shape index: {}]
  %s4 = inlined_call_operand.vmem [shape: f32[4,1], index: 4, kind: input, shape index: {}]
  %s5 = inlined_call_operand.hbm [shape: f32[4,8], index: 5, kind: output, shape index: {}]
  %s6 = sld [smem:[#allocation0]]
  $region30: #{tpu_custom_call.1} parent=0
    _
  %s8 = ssub.s32 1, %s6
  %s9 = scalar_select 0, %s8, %s6
  $region1: #{tpu_custom_call.1} parent=0
    #allocation2 [shape = 'u8[2048]{0}', space=vmem, size = 0x800, scoped, tag = 'output window, operand 0, single buffered']
    #allocation3 [shape = 's32[1]{0}', space=sflag, size = 0x4, scoped, tag = 'scoped memory for tpu_custom_call.1']
    %10 = vsyncpa [#allocation3], 0
    // Predicated region
    $region2: #{tpu_custom_call.1} parent=1 // pred_check
      _
    $region3: #{tpu_custom_call.1} parent=1 // pred_check_branch
      %12 = sbr.rel (0) target = $region5
    $region4: #{tpu_custom_call.1} parent=1 // pred_region
      _
    $region5: #{tpu_custom_call.1} parent=1 // pred_fallthru
      _
    // Predicated region
    $region6: #{tpu_custom_call.1} parent=1 // pred_check
      _
    $region7: #{tpu_custom_call.1} parent=1 // pred_check_branch
      %14 = sbr.rel (0) target = $region9
    $region8: #{tpu_custom_call.1} parent=1 // pred_region
      _
    $region9: #{tpu_custom_call.1} parent=1 // pred_fallthru
      _
    // Predicated region
    $region10: #{tpu_custom_call.1} parent=1 // pred_check
      _
    $region11: #{tpu_custom_call.1} parent=1 // pred_check_branch
      %16 = sbr.rel (0) target = $region13
    $region12: #{tpu_custom_call.1} parent=1 // pred_region
      _
    $region13: #{tpu_custom_call.1} parent=1 // pred_fallthru
      _
    // Predicated region
    $region14: #{tpu_custom_call.1} parent=1 // pred_check
      _
    $region15: #{tpu_custom_call.1} parent=1 // pred_check_branch
      %18 = sbr.rel (0) target = $region17
    $region16: #{tpu_custom_call.1} parent=1 // pred_region
      _
    $region17: #{tpu_custom_call.1} parent=1 // pred_fallthru
      _
    // Predicated region
    $region18: #{tpu_custom_call.1} parent=1 // pred_check
      _
    $region19: #{tpu_custom_call.1} parent=1 // pred_check_branch
      %20 = sbr.rel (0) target = $region21
    $region20: #{tpu_custom_call.1} parent=1 // pred_region
      _
    $region21: #{tpu_custom_call.1} parent=1 // pred_fallthru
      _
    %v21 = vld [vmem:[%s1] sm:$0xff]
    %v22 = vld [vmem:[%s1 + $0x8] sm:$0xff]
    %v23 = vld [vmem:[%s1 + $0x10] sm:$0xff]
    %v24 = vld [vmem:[%s1 + $0x18] sm:$0xff]
    %v25 = vld [vmem:[%s0] sm:$0xff]
    %v26 = vld [vmem:[%s0 + $0x8] sm:$0xff]
    %v27 = vld [vmem:[%s2] sm:$0xff]
    %v28 = vld [vmem:[%s2 + $0x8] sm:$0xff]
    %v29 = vld [vmem:[%s2 + $0x10] sm:$0xff]
    %v30 = vld [vmem:[%s2 + $0x18] sm:$0xff]
    %32 = vset.pattern.permute.xlu0 0
    %33 = vperm.xlu0 %32, %v27
    %v34 = vpop.permute.xlu0 %33
    %37 = vset.pattern.permute.xlu0 0
    %38 = vperm.xlu0 %37, %v28
    %v39 = vpop.permute.xlu0 %38
    %42 = vset.pattern.permute.xlu0 0
    %43 = vperm.xlu0 %42, %v29
    %v44 = vpop.permute.xlu0 %43
    %47 = vset.pattern.permute.xlu0 0
    %48 = vperm.xlu0 %47, %v30
    %v49 = vpop.permute.xlu0 %48
    %vm51 = vcmask 130048
    %v53 = vsel %vm51, %v21, 0
    %v56 = vsel %vm51, %v22, 0
    %v59 = vsel %vm51, %v23, 0
    %v62 = vsel %vm51, %v24, 0
    %64 = vmatpush.msra.mxu0 0.0
    %65 = vmatpush.msra.mxu0 0.0
    %66 = vmatpush.msra.mxu0 0.0
    %67 = vmatpush.msra.mxu0 0.0
    %68 = vmatpush.msra.mxu0 0.0
    %69 = vmatpush.msra.mxu0 0.0
    %70 = vmatpush.msra.mxu0 0.0
    %71 = vmatpush.msra.mxu0 0.0
    %72 = vmatpush.msra.mxu0 0.0
    %73 = vmatpush.msra.mxu0 0.0
    %74 = vmatpush.msra.mxu0 0.0
    %75 = vmatpush.msra.mxu0 0.0
    %76 = vmatpush.msra.mxu0 0.0
    %77 = vmatpush.msra.mxu0 0.0
    %78 = vmatpush.msra.mxu0 %v26
    %79 = vmatpush.msra.mxu0 %v25
    %80 = vmatmul.f32.gmra.mxu0 %v53
    %v81 = vpop.f32.mrf.mxu0
    %v82 = vadd.f32 %v34, %v81
    %83 = vmatmul.f32.gmra.mxu0 %v56
    %v84 = vpop.f32.mrf.mxu0
    %v85 = vadd.f32 %v39, %v84
    %86 = vmatmul.f32.gmra.mxu0 %v59
    %v87 = vpop.f32.mrf.mxu0
    %v88 = vadd.f32 %v44, %v87
    %89 = vmatmul.f32.gmra.mxu0 %v62
    %v90 = vpop.f32.mrf.mxu0
    %v91 = vadd.f32 %v49, %v90
    %92 = vdwg.mxu0
    %vm93 = vcmask 64512
    %v94 = vsel %vm93, %v82, 0.0
    %v95 = vsel %vm93, %v85, 0.0
    %v96 = vadd.f32 %v94, %v95
    %v97 = vsel %vm93, %v88, 0.0
    %v98 = vadd.f32 %v96, %v97
    %v99 = vsel %vm93, %v91, 0.0
    %v100 = vadd.f32 %v98, %v99
    %v101 = vrot.slane %v100, 4
    %v102 = vadd.f32 %v100, %v101
    %v103 = vrot.slane %v102, 2
    %v104 = vadd.f32 %v102, %v103
    %v105 = vrot.slane %v104, 1
    %v106 = vadd.f32 %v104, %v105
    %v107 = vrcp.pop 32.0
    %v108 = vmul.f32 32.0, %v107
    %v109 = vsub.f32 1.0, %v108
    %v110 = vmul.f32 %v107, %v109
    %v111 = vadd.f32 %v107, %v110
    %vm112 = vweird.f32 %v107
    %v113 = vsel %vm112, %v107, %v111
    %v114 = vmul.f32 %v106, %v113
    %v115 = vsub.f32 %v82, %v114
    %v116 = vsub.f32 %v85, %v114
    %v117 = vsub.f32 %v88, %v114
    %v118 = vsub.f32 %v91, %v114
    %v119 = vmul.f32 %v115, %v115
    %v120 = vmul.f32 %v116, %v116
    %v121 = vmul.f32 %v117, %v117
    %v122 = vmul.f32 %v118, %v118
    %v123 = vsel %vm93, %v119, 0.0
    %v124 = vsel %vm93, %v120, 0.0
    %v125 = vadd.f32 %v123, %v124
    %v126 = vsel %vm93, %v121, 0.0
    %v127 = vadd.f32 %v125, %v126
    %v128 = vsel %vm93, %v122, 0.0
    %v129 = vadd.f32 %v127, %v128
    %v130 = vrot.slane %v129, 4
    %v131 = vadd.f32 %v129, %v130
    %v132 = vrot.slane %v131, 2
    %v133 = vadd.f32 %v131, %v132
    %v134 = vrot.slane %v133, 1
    %v135 = vadd.f32 %v133, %v134
    %v136 = vmul.f32 %v135, %v113
    %v137 = vadd.f32 %v136, 1e-05
    %v138 = vrsqrt.pop %v137
    %v139 = vmul.f32 %v138, %v137
    %v140 = vmul.f32 %v139, %v138
    %v141 = vmul.f32 0.5, %v140
    %v142 = vsub.f32 1.5, %v141
    %v143 = vmul.f32 %v138, %v142
    %vm144 = vweird.f32 %v137
    %vm145 = vweird.f32 %v138
    %vm146 = vmor %vm144, %vm145
    %v147 = vsel %vm146, %v138, %v143
    %v148 = vmul.f32 %v115, %v147
    %v149 = vmul.f32 %v116, %v147
    %v150 = vmul.f32 %v117, %v147
    %v151 = vmul.f32 %v118, %v147
    %152 = vset.pattern.permute.xlu0 1
    %153 = vperm.xlu0 %152, %v27
    %v154 = vpop.permute.xlu0 %153
    %156 = vset.pattern.permute.xlu0 1
    %157 = vperm.xlu0 %156, %v28
    %v158 = vpop.permute.xlu0 %157
    %160 = vset.pattern.permute.xlu0 1
    %161 = vperm.xlu0 %160, %v29
    %v162 = vpop.permute.xlu0 %161
    %164 = vset.pattern.permute.xlu0 1
    %165 = vperm.xlu0 %164, %v30
    %v166 = vpop.permute.xlu0 %165
    %v168 = vmul.f32 %v148, %v154
    %v169 = vmul.f32 %v149, %v158
    %v170 = vmul.f32 %v150, %v162
    %v171 = vmul.f32 %v151, %v166
    %172 = vset.pattern.permute.xlu0 2
    %173 = vperm.xlu0 %172, %v27
    %v174 = vpop.permute.xlu0 %173
    %176 = vset.pattern.permute.xlu0 2
    %177 = vperm.xlu0 %176, %v28
    %v178 = vpop.permute.xlu0 %177
    %180 = vset.pattern.permute.xlu0 2
    %181 = vperm.xlu0 %180, %v29
    %v182 = vpop.permute.xlu0 %181
    %184 = vset.pattern.permute.xlu0 2
    %185 = vperm.xlu0 %184, %v30
    %v186 = vpop.permute.xlu0 %185
    %v188 = vadd.f32 %v168, %v174
    %v189 = vadd.f32 %v169, %v178
    %v190 = vadd.f32 %v170, %v182
    %v191 = vadd.f32 %v171, %v186
    %v192 = vmax.f32 %v188, 0.0
    %v193 = vmax.f32 %v189, 0.0
    %v194 = vmax.f32 %v190, 0.0
    %v195 = vmax.f32 %v191, 0.0
    %v196 = vld [vmem:[%s3] sm:$0xf]
    %v197 = vld [vmem:[%s4] sm:$0xf]
    %199 = vset.pattern.permute.xlu0 0
    %200 = vperm.xlu0 %199, %v197
    %v201 = vpop.permute.xlu0 %200
    %vm203 = vcmask 261120
    %v205 = vsel %vm203, %v196, 0
    %207 = vmatpush.msra.mxu0 0.0
    %208 = vmatpush.msra.mxu0 0.0
    %209 = vmatpush.msra.mxu0 0.0
    %210 = vmatpush.msra.mxu0 0.0
    %211 = vmatpush.msra.mxu0 0.0
    %212 = vmatpush.msra.mxu0 0.0
    %213 = vmatpush.msra.mxu0 0.0
    %214 = vmatpush.msra.mxu0 0.0
    %215 = vmatpush.msra.mxu0 0.0
    %216 = vmatpush.msra.mxu0 0.0
    %217 = vmatpush.msra.mxu0 0.0
    %218 = vmatpush.msra.mxu0 0.0
    %219 = vmatpush.msra.mxu0 %v195
    %220 = vmatpush.msra.mxu0 %v194
    %221 = vmatpush.msra.mxu0 %v193
    %222 = vmatpush.msra.mxu0 %v192
    %223 = vmatmul.f32.gmra.mxu0 %v205
    %v224 = vpop.f32.mrf.mxu0
    %v225 = vadd.f32 %v201, %v224
    %226 = vdwg.mxu0
    %vm227 = vcmask 60416
    %228 = vst.msk [vmem:[#allocation2] sm:$0xf] %vm227, %v225
    // Predicated region
    $region22: #{tpu_custom_call.1} parent=1 // pred_check
      _
    $region23: #{tpu_custom_call.1} parent=1 // pred_check_branch
      %230 = sbr.rel (0) target = $region25
    $region24: #{tpu_custom_call.1} parent=1 // pred_region
      %232 = vsyncadd [#allocation3], 0
      %s234 = sshll.u32 [#allocation2], 4
      %s235 = int_to_ptr.vmem [resolvable:$true] %s234
      %s236 = sshll.u32 %s5, 4
      %s237 = int_to_ptr.hbm [resolvable:$true] %s236
      %239 = dma.vmem_to_hbm [thread:$0]  %s235, 64, %s237, [#allocation3]
    $region25: #{tpu_custom_call.1} parent=1 // pred_fallthru
      _
    // Predicated region
    $region26: #{tpu_custom_call.1} parent=1 // pred_check
      _
    $region27: #{tpu_custom_call.1} parent=1 // pred_check_branch
      %241 = sbr.rel (0) target = $region29
    $region28: #{tpu_custom_call.1} parent=1 // pred_region
      %243 = dma.done [#allocation3], 64
    $region29: #{tpu_custom_call.1} parent=1 // pred_fallthru
      _
    %244 = vsyncpa [#allocation3], 1

</llo_original>
